<compile_context>
chip_gen: v6e
topology: v6e:2x2x1
jax: 0.10.0
libtpu: 0.0.40
codegen_flags: <defaults>
</compile_context>

<pallas_src>
import functools

import jax
import jax.numpy as jnp
from jax import lax
from jax.experimental import pallas as pl
from jax.experimental.pallas import tpu as pltpu

INPUT_DIM = 16
HIDDEN_DIM = 32      # forced by h0 = torch.zeros(1, 1, 32) in the module
N_CLASSES = 5
SEQ_LEN = 8
OUT_PAD = 128        # lane-dense padded output width


def rnn_fwd_kernel(x_ref, wih_t_ref, whh_t_ref, b_ref, wfc_t_ref, bfc_ref, o_ref):
    """Whole forward pass for one sequence (batch = 1), everything in VMEM."""
    seq = x_ref.shape[0]
    hidden = whh_t_ref.shape[0]

    # Hoisted input projection: ONE (seq, input_dim) @ (input_dim, hidden)
    # matmul + bias, instead of `seq` degenerate (1, input_dim) matmuls on the
    # serial critical path.
    x_proj = (jnp.dot(x_ref[...], wih_t_ref[...],
                      preferred_element_type=jnp.float32)
              + b_ref[...])                                      # (seq, hidden)

    whh_t = whh_t_ref[...]                                       # (hidden, hidden)

    # Statically unrolled recurrence (seq is a compile-time constant): the
    # per-step body is just one tiny MXU matmul + add + tanh.
    h = jnp.zeros((1, hidden), jnp.float32)                      # h0 = 0
    for t in range(seq):
        h = jnp.tanh(x_proj[t:t + 1, :]
                     + jnp.dot(h, whh_t,
                               preferred_element_type=jnp.float32))

    # fc: (1, hidden) @ (hidden, OUT_PAD) + bias  (columns >= N_CLASSES are pad)
    logits = (jnp.dot(h, wfc_t_ref[...],
                      preferred_element_type=jnp.float32)
              + bfc_ref[...])                                    # (1, OUT_PAD)

    # Masked log-softmax over the real N_CLASSES columns only.  Exponentiate
    # the already-masked tensor so pad lanes contribute exactly 0 (and never
    # produce transient infs).
    col = lax.broadcasted_iota(jnp.int32, logits.shape, 1)
    mask = col < N_CLASSES
    masked = jnp.where(mask, logits, jnp.full_like(logits, -1e30))
    m = jnp.max(masked, axis=-1, keepdims=True)
    exps = jnp.exp(masked - m)
    lse = jnp.log(jnp.sum(exps, axis=-1, keepdims=True))
    o_ref[...] = logits - m - lse


def prepare_params(w_ih, w_hh, b_ih, b_hh, w_fc, b_fc):
    """One-time (model-init) parameter preprocessing.

    w_ih:  (hidden, input_dim)   b_ih: (hidden,)
    w_hh:  (hidden, hidden)      b_hh: (hidden,)
    w_fc:  (N_CLASSES, hidden)   b_fc: (N_CLASSES,)
    Returns pre-transposed / pre-padded params so the forward path is a
    single pallas_call.
    """
    hidden = w_hh.shape[0]

    w_ih_t = w_ih.T.astype(jnp.float32)                          # (input_dim, hidden)
    w_hh_t = w_hh.T.astype(jnp.float32)                          # (hidden, hidden)
    b = (b_ih + b_hh).reshape(1, hidden).astype(jnp.float32)     # (1, hidden)

    w_fc_t = jnp.zeros((hidden, OUT_PAD), jnp.float32)
    w_fc_t = w_fc_t.at[:, :N_CLASSES].set(w_fc.T.astype(jnp.float32))
    b_fc_p = jnp.zeros((1, OUT_PAD), jnp.float32)
    b_fc_p = b_fc_p.at[:, :N_CLASSES].set(b_fc.astype(jnp.float32))

    return (w_ih_t, w_hh_t, b, w_fc_t, b_fc_p)


@functools.partial(jax.jit, static_argnums=())
def rnn_forward(x, params):
    """Forward pass.  `params` come from prepare_params; x: (seq, input_dim).

    Returns (1, N_CLASSES) log-probabilities.
    """
    w_ih_t, w_hh_t, b, w_fc_t, b_fc_p = params

    vmem = pl.BlockSpec(memory_space=pltpu.MemorySpace.VMEM)
    out = pl.pallas_call(
        rnn_fwd_kernel,
        out_shape=jax.ShapeDtypeStruct((1, OUT_PAD), jnp.float32),
        in_specs=[vmem] * 6,
        out_specs=vmem,
    )(x.astype(jnp.float32), w_ih_t, w_hh_t, b, w_fc_t, b_fc_p)

    return out[:, :N_CLASSES]


def rnn_forward_ref(x, w_ih, w_hh, b_ih, b_hh, w_fc, b_fc):
    """Pure-JAX reference for validation."""
    h = jnp.zeros((1, HIDDEN_DIM), jnp.float32)
    for t in range(x.shape[0]):
        h = jnp.tanh(x[t:t + 1] @ w_ih.T + b_ih + h @ w_hh.T + b_hh)
    out = h @ w_fc.T + b_fc
    return jax.nn.log_softmax(out, axis=-1)


if __name__ == "__main__":
    key = jax.random.PRNGKey(0)
    kx, k1, k2, k3, k4, k5, k6 = jax.random.split(key, 7)

    scale = 1.0 / jnp.sqrt(HIDDEN_DIM)
    x = jax.random.normal(kx, (SEQ_LEN, INPUT_DIM), jnp.float32)
    w_ih = jax.random.uniform(k1, (HIDDEN_DIM, INPUT_DIM), jnp.float32, -scale, scale)
    w_hh = jax.random.uniform(k2, (HIDDEN_DIM, HIDDEN_DIM), jnp.float32, -scale, scale)
    b_ih = jax.random.uniform(k3, (HIDDEN_DIM,), jnp.float32, -scale, scale)
    b_hh = jax.random.uniform(k4, (HIDDEN_DIM,), jnp.float32, -scale, scale)
    w_fc = jax.random.uniform(k5, (N_CLASSES, HIDDEN_DIM), jnp.float32, -scale, scale)
    b_fc = jax.random.uniform(k6, (N_CLASSES,), jnp.float32, -scale, scale)

    # One-time parameter preprocessing (cached across forward calls).
    params = jax.tree_util.tree_map(jax.block_until_ready,
                                    prepare_params(w_ih, w_hh, b_ih, b_hh, w_fc, b_fc))

    pred = rnn_forward(x, params)
    jax.block_until_ready(pred)

    ref = rnn_forward_ref(x, w_ih, w_hh, b_ih, b_hh, w_fc, b_fc)
    assert pred.shape == (1, N_CLASSES)
    assert jnp.allclose(pred, ref, atol=1e-5, rtol=1e-5)

    print("KERNEL_OK")
</pallas_src>

<mosaic_0001>
module attributes {stable_mosaic.version = 11 : i64} {
  func.func @rnn_fwd_kernel(%arg0: memref<8x16xf32, #tpu.memory_space<vmem>>, %arg1: memref<16x32xf32, #tpu.memory_space<vmem>>, %arg2: memref<32x32xf32, #tpu.memory_space<vmem>>, %arg3: memref<1x32xf32, #tpu.memory_space<vmem>>, %arg4: memref<32x128xf32, #tpu.memory_space<vmem>>, %arg5: memref<1x128xf32, #tpu.memory_space<vmem>>, %arg6: memref<1x128xf32, #tpu.memory_space<vmem>>) attributes {dimension_semantics = [], scalar_prefetch = 0 : i64, scratch_operands = 0 : i64, tpu.core_type = #tpu.core_type<tc>} {
    %c0 = arith.constant 0 : index
    %c0_0 = arith.constant 0 : index
    %0 = vector.load %arg0[%c0, %c0_0] : memref<8x16xf32, #tpu.memory_space<vmem>>, vector<8x16xf32>
    %c0_1 = arith.constant 0 : index
    %c0_2 = arith.constant 0 : index
    %1 = vector.load %arg1[%c0_1, %c0_2] : memref<16x32xf32, #tpu.memory_space<vmem>>, vector<16x32xf32>
    %cst = arith.constant dense<0.000000e+00> : vector<8x32xf32>
    %2 = tpu.matmul %0, %1, %cst {dimension_numbers = #tpu.dot_dimension_numbers<[1], [0], [0], [1], [0, 0, 1, 1], [], []>} : vector<8x16xf32>, vector<16x32xf32>, vector<8x32xf32> -> vector<8x32xf32>
    %c0_3 = arith.constant 0 : index
    %c0_4 = arith.constant 0 : index
    %3 = vector.load %arg3[%c0_3, %c0_4] : memref<1x32xf32, #tpu.memory_space<vmem>>, vector<1x32xf32>
    %4 = vector.broadcast %3 : vector<1x32xf32> to vector<8x32xf32>
    %5 = arith.addf %2, %4 : vector<8x32xf32>
    %c0_5 = arith.constant 0 : index
    %c0_6 = arith.constant 0 : index
    %6 = vector.load %arg2[%c0_5, %c0_6] : memref<32x32xf32, #tpu.memory_space<vmem>>, vector<32x32xf32>
    %cst_7 = arith.constant 0.000000e+00 : f32
    %7 = vector.broadcast %cst_7 : f32 to vector<1x32xf32>
    %8 = vector.extract_strided_slice %5 {offsets = [0, 0], sizes = [1, 32], strides = [1, 1]} : vector<8x32xf32> to vector<1x32xf32>
    %cst_8 = arith.constant dense<0.000000e+00> : vector<1x32xf32>
    %9 = tpu.matmul %7, %6, %cst_8 {dimension_numbers = #tpu.dot_dimension_numbers<[1], [0], [0], [1], [0, 0, 1, 1], [], []>} : vector<1x32xf32>, vector<32x32xf32>, vector<1x32xf32> -> vector<1x32xf32>
    %10 = arith.addf %8, %9 : vector<1x32xf32>
    %11 = math.tanh %10 : vector<1x32xf32>
    %12 = vector.extract_strided_slice %5 {offsets = [1, 0], sizes = [1, 32], strides = [1, 1]} : vector<8x32xf32> to vector<1x32xf32>
    %cst_9 = arith.constant dense<0.000000e+00> : vector<1x32xf32>
    %13 = tpu.matmul %11, %6, %cst_9 {dimension_numbers = #tpu.dot_dimension_numbers<[1], [0], [0], [1], [0, 0, 1, 1], [], []>} : vector<1x32xf32>, vector<32x32xf32>, vector<1x32xf32> -> vector<1x32xf32>
    %14 = arith.addf %12, %13 : vector<1x32xf32>
    %15 = math.tanh %14 : vector<1x32xf32>
    %16 = vector.extract_strided_slice %5 {offsets = [2, 0], sizes = [1, 32], strides = [1, 1]} : vector<8x32xf32> to vector<1x32xf32>
    %cst_10 = arith.constant dense<0.000000e+00> : vector<1x32xf32>
    %17 = tpu.matmul %15, %6, %cst_10 {dimension_numbers = #tpu.dot_dimension_numbers<[1], [0], [0], [1], [0, 0, 1, 1], [], []>} : vector<1x32xf32>, vector<32x32xf32>, vector<1x32xf32> -> vector<1x32xf32>
    %18 = arith.addf %16, %17 : vector<1x32xf32>
    %19 = math.tanh %18 : vector<1x32xf32>
    %20 = vector.extract_strided_slice %5 {offsets = [3, 0], sizes = [1, 32], strides = [1, 1]} : vector<8x32xf32> to vector<1x32xf32>
    %cst_11 = arith.constant dense<0.000000e+00> : vector<1x32xf32>
    %21 = tpu.matmul %19, %6, %cst_11 {dimension_numbers = #tpu.dot_dimension_numbers<[1], [0], [0], [1], [0, 0, 1, 1], [], []>} : vector<1x32xf32>, vector<32x32xf32>, vector<1x32xf32> -> vector<1x32xf32>
    %22 = arith.addf %20, %21 : vector<1x32xf32>
    %23 = math.tanh %22 : vector<1x32xf32>
    %24 = vector.extract_strided_slice %5 {offsets = [4, 0], sizes = [1, 32], strides = [1, 1]} : vector<8x32xf32> to vector<1x32xf32>
    %cst_12 = arith.constant dense<0.000000e+00> : vector<1x32xf32>
    %25 = tpu.matmul %23, %6, %cst_12 {dimension_numbers = #tpu.dot_dimension_numbers<[1], [0], [0], [1], [0, 0, 1, 1], [], []>} : vector<1x32xf32>, vector<32x32xf32>, vector<1x32xf32> -> vector<1x32xf32>
    %26 = arith.addf %24, %25 : vector<1x32xf32>
    %27 = math.tanh %26 : vector<1x32xf32>
    %28 = vector.extract_strided_slice %5 {offsets = [5, 0], sizes = [1, 32], strides = [1, 1]} : vector<8x32xf32> to vector<1x32xf32>
    %cst_13 = arith.constant dense<0.000000e+00> : vector<1x32xf32>
    %29 = tpu.matmul %27, %6, %cst_13 {dimension_numbers = #tpu.dot_dimension_numbers<[1], [0], [0], [1], [0, 0, 1, 1], [], []>} : vector<1x32xf32>, vector<32x32xf32>, vector<1x32xf32> -> vector<1x32xf32>
    %30 = arith.addf %28, %29 : vector<1x32xf32>
    %31 = math.tanh %30 : vector<1x32xf32>
    %32 = vector.extract_strided_slice %5 {offsets = [6, 0], sizes = [1, 32], strides = [1, 1]} : vector<8x32xf32> to vector<1x32xf32>
    %cst_14 = arith.constant dense<0.000000e+00> : vector<1x32xf32>
    %33 = tpu.matmul %31, %6, %cst_14 {dimension_numbers = #tpu.dot_dimension_numbers<[1], [0], [0], [1], [0, 0, 1, 1], [], []>} : vector<1x32xf32>, vector<32x32xf32>, vector<1x32xf32> -> vector<1x32xf32>
    %34 = arith.addf %32, %33 : vector<1x32xf32>
    %35 = math.tanh %34 : vector<1x32xf32>
    %36 = vector.extract_strided_slice %5 {offsets = [7, 0], sizes = [1, 32], strides = [1, 1]} : vector<8x32xf32> to vector<1x32xf32>
    %cst_15 = arith.constant dense<0.000000e+00> : vector<1x32xf32>
    %37 = tpu.matmul %35, %6, %cst_15 {dimension_numbers = #tpu.dot_dimension_numbers<[1], [0], [0], [1], [0, 0, 1, 1], [], []>} : vector<1x32xf32>, vector<32x32xf32>, vector<1x32xf32> -> vector<1x32xf32>
    %38 = arith.addf %36, %37 : vector<1x32xf32>
    %39 = math.tanh %38 : vector<1x32xf32>
    %c0_16 = arith.constant 0 : index
    %c0_17 = arith.constant 0 : index
    %40 = vector.load %arg4[%c0_16, %c0_17] : memref<32x128xf32, #tpu.memory_space<vmem>>, vector<32x128xf32>
    %cst_18 = arith.constant dense<0.000000e+00> : vector<1x128xf32>
    %41 = tpu.matmul %39, %40, %cst_18 {dimension_numbers = #tpu.dot_dimension_numbers<[1], [0], [0], [1], [0, 0, 1, 1], [], []>} : vector<1x32xf32>, vector<32x128xf32>, vector<1x128xf32> -> vector<1x128xf32>
    %c0_19 = arith.constant 0 : index
    %c0_20 = arith.constant 0 : index
    %42 = vector.load %arg5[%c0_19, %c0_20] : memref<1x128xf32, #tpu.memory_space<vmem>>, vector<1x128xf32>
    %43 = arith.addf %41, %42 : vector<1x128xf32>
    %44 = tpu.iota {dimensions = array<i32: 1>} : vector<1x128xi32>
    %c5_i32 = arith.constant 5 : i32
    %45 = vector.broadcast %c5_i32 : i32 to vector<1x128xi32>
    %46 = arith.cmpi slt, %44, %45 : vector<1x128xi32>
    %cst_21 = arith.constant -1.000000e+30 : f32
    %47 = vector.broadcast %cst_21 : f32 to vector<1x128xf32>
    %48 = arith.select %46, %43, %47 : vector<1x128xi1>, vector<1x128xf32>
    %cst_22 = arith.constant dense<0xFF800000> : vector<1xf32>
    %49 = vector.multi_reduction <maximumf>, %48, %cst_22 [1] : vector<1x128xf32> to vector<1xf32>
    %50 = vector.shape_cast %49 : vector<1xf32> to vector<1x1xf32>
    %51 = vector.broadcast %50 : vector<1x1xf32> to vector<1x128xf32>
    %52 = arith.subf %48, %51 : vector<1x128xf32>
    %53 = math.exp %52 : vector<1x128xf32>
    %cst_23 = arith.constant dense<0.000000e+00> : vector<1xf32>
    %54 = vector.multi_reduction <add>, %53, %cst_23 [1] : vector<1x128xf32> to vector<1xf32>
    %55 = vector.shape_cast %54 : vector<1xf32> to vector<1x1xf32>
    %56 = math.log %55 : vector<1x1xf32>
    %57 = vector.broadcast %50 : vector<1x1xf32> to vector<1x128xf32>
    %58 = arith.subf %43, %57 : vector<1x128xf32>
    %59 = vector.broadcast %56 : vector<1x1xf32> to vector<1x128xf32>
    %60 = arith.subf %58, %59 : vector<1x128xf32>
    %c0_24 = arith.constant 0 : index
    %c0_25 = arith.constant 0 : index
    %61 = vector.load %arg6[%c0_24, %c0_25] : memref<1x128xf32, #tpu.memory_space<vmem>>, vector<1x128xf32>
    tpu.vector_store %arg6[%c0_24, %c0_25], %60 {strides = array<i32>} : memref<1x128xf32, #tpu.memory_space<vmem>>, vector<1x128xf32>,
    return
  }
}

</mosaic_0001>

<llo_original>
// kernel: rnn_forward.1
$region0: #{rnn_forward.1}
  #allocation0 [shape = 'u32[]', space=smem, size = 0x4, offset = 0x4, fixed_abs, tag = 'smem constant byte address 0x4 - core index']
  #allocation1 [shape = 'u32[144,128]{1,0:T(1,128)}', space=vmem, size = 0x12000, scoped, tag = 'internal scratch']
  %s0 = inlined_call_operand.hbm [shape: f32[8,16], index: 0, kind: input, shape index: {}]
  %s1 = inlined_call_operand.hbm [shape: f32[16,32], index: 1, kind: input, shape index: {}]
  %s2 = inlined_call_operand.hbm [shape: f32[32,32], index: 2, kind: input, shape index: {}]
  %s3 = inlined_call_operand.vmem [shape: f32[1,32], index: 3, kind: input, shape index: {}]
  %s4 = inlined_call_operand.hbm [shape: f32[32,128], index: 4, kind: input, shape index: {}]
  %s5 = inlined_call_operand.vmem [shape: f32[1,128], index: 5, kind: input, shape index: {}]
  %s6 = inlined_call_operand.hbm [shape: f32[1,128], index: 6, kind: output, shape index: {}]
  %s7 = sld [smem:[#allocation0]]
  $region50: #{rnn_forward.1} parent=0
    _
  %s9 = ssub.s32 1, %s7
  %s10 = scalar_select 0, %s9, %s7
  $region1: #{rnn_forward.1} parent=0
    #allocation2 [shape = 'u8[4096]{0}', space=vmem, size = 0x1000, scoped, tag = 'input window, operand 0, single buffered']
    #allocation3 [shape = 's32[1]{0}', space=sflag, size = 0x4, scoped, tag = 'scoped memory for rnn_forward.1']
    #allocation4 [shape = 's32[1]{0}', space=sflag, size = 0x4, scoped, tag = 'scoped memory for rnn_forward.1']
    #allocation5 [shape = 'u8[8192]{0}', space=vmem, size = 0x2000, scoped, tag = 'input window, operand 1, single buffered']
    #allocation6 [shape = 's32[1]{0}', space=sflag, size = 0x4, scoped, tag = 'scoped memory for rnn_forward.1']
    #allocation7 [shape = 'u8[16384]{0}', space=vmem, size = 0x4000, scoped, tag = 'input window, operand 2, single buffered']
    #allocation8 [shape = 'u8[16384]{0}', space=vmem, size = 0x4000, scoped, tag = 'input window, operand 4, single buffered']
    #allocation9 [shape = 's32[1]{0}', space=sflag, size = 0x4, scoped, tag = 'scoped memory for rnn_forward.1']
    #allocation10 [shape = 'u8[512]{0}', space=vmem, size = 0x400, scoped, tag = 'output window, operand 0, single buffered']
    %11 = vsyncpa [#allocation3], 0
    %12 = vsyncpa [#allocation6], 0
    %13 = vsyncpa [#allocation9], 0
    %14 = vsyncpa [#allocation4], 0
    // Predicated region
    $region2: #{rnn_forward.1} parent=1 // pred_check
      _
    $region3: #{rnn_forward.1} parent=1 // pred_check_branch
      %16 = sbr.rel (0) target = $region5
    $region4: #{rnn_forward.1} parent=1 // pred_region
      %s18 = ssub.s32 128, 128
      %19 = vsyncadd [#allocation3], %s18
      %s21 = sshll.u32 [#allocation2], 4
      %s22 = int_to_ptr.vmem [resolvable:$true] %s21
      %24 = dma.hbm_to_vmem [thread:$0]  %s0, 128, %s22, [#allocation3]
    $region5: #{rnn_forward.1} parent=1 // pred_fallthru
      _
    // Predicated region
    $region6: #{rnn_forward.1} parent=1 // pred_check
      _
    $region7: #{rnn_forward.1} parent=1 // pred_check_branch
      %26 = sbr.rel (0) target = $region9
    $region8: #{rnn_forward.1} parent=1 // pred_region
      %s28 = ssub.s32 256, 256
      %29 = vsyncadd [#allocation6], %s28
      %s30 = sshll.u32 [#allocation5], 4
      %s31 = int_to_ptr.vmem [resolvable:$true] %s30
      %36 = dma.hbm_to_vmem [thread:$0]  %s1, 256, %s31, [#allocation6], 128, 128, 8
    $region9: #{rnn_forward.1} parent=1 // pred_fallthru
      _
    // Predicated region
    $region10: #{rnn_forward.1} parent=1 // pred_check
      _
    $region11: #{rnn_forward.1} parent=1 // pred_check_branch
      %38 = sbr.rel (0) target = $region13
    $region12: #{rnn_forward.1} parent=1 // pred_region
      %s40 = ssub.s32 512, 512
      %41 = vsyncadd [#allocation6], %s40
      %s42 = sshll.u32 [#allocation7], 4
      %s43 = int_to_ptr.vmem [resolvable:$true] %s42
      %48 = dma.hbm_to_vmem [thread:$0]  %s2, 512, %s43, [#allocation6], 128, 128, 8
    $region13: #{rnn_forward.1} parent=1 // pred_fallthru
      _
    // Predicated region
    $region14: #{rnn_forward.1} parent=1 // pred_check
      _
    $region15: #{rnn_forward.1} parent=1 // pred_check_branch
      %50 = sbr.rel (0) target = $region17
    $region16: #{rnn_forward.1} parent=1 // pred_region
      _
    $region17: #{rnn_forward.1} parent=1 // pred_fallthru
      _
    // Predicated region
    $region18: #{rnn_forward.1} parent=1 // pred_check
      _
    $region19: #{rnn_forward.1} parent=1 // pred_check_branch
      %52 = sbr.rel (0) target = $region21
    $region20: #{rnn_forward.1} parent=1 // pred_region
      %s54 = ssub.s32 512, 512
      %55 = vsyncadd [#allocation9], %s54
      %s56 = sshll.u32 [#allocation8], 4
      %s57 = int_to_ptr.vmem [resolvable:$true] %s56
      %62 = dma.hbm_to_vmem [thread:$0]  %s4, 512, %s57, [#allocation9], 128, 128, 8
    $region21: #{rnn_forward.1} parent=1 // pred_fallthru
      _
    // Predicated region
    $region22: #{rnn_forward.1} parent=1 // pred_check
      _
    $region23: #{rnn_forward.1} parent=1 // pred_check_branch
      %64 = sbr.rel (0) target = $region25
    $region24: #{rnn_forward.1} parent=1 // pred_region
      _
    $region25: #{rnn_forward.1} parent=1 // pred_fallthru
      _
    // Predicated region
    $region26: #{rnn_forward.1} parent=1 // pred_check
      _
    $region27: #{rnn_forward.1} parent=1 // pred_check_branch
      %66 = sbr.rel (0) target = $region29
    $region28: #{rnn_forward.1} parent=1 // pred_region
      %67 = dma.done [#allocation3], 128
    $region29: #{rnn_forward.1} parent=1 // pred_fallthru
      _
    // Predicated region
    $region30: #{rnn_forward.1} parent=1 // pred_check
      _
    $region31: #{rnn_forward.1} parent=1 // pred_check_branch
      %69 = sbr.rel (0) target = $region33
    $region32: #{rnn_forward.1} parent=1 // pred_region
      %70 = dma.done [#allocation6], 256
    $region33: #{rnn_forward.1} parent=1 // pred_fallthru
      _
    // Predicated region
    $region34: #{rnn_forward.1} parent=1 // pred_check
      _
    $region35: #{rnn_forward.1} parent=1 // pred_check_branch
      %72 = sbr.rel (0) target = $region37
    $region36: #{rnn_forward.1} parent=1 // pred_region
      %73 = dma.done [#allocation6], 512
    $region37: #{rnn_forward.1} parent=1 // pred_fallthru
      _
    // Predicated region
    $region38: #{rnn_forward.1} parent=1 // pred_check
      _
    $region39: #{rnn_forward.1} parent=1 // pred_check_branch
      %75 = sbr.rel (0) target = $region41
    $region40: #{rnn_forward.1} parent=1 // pred_region
      %76 = dma.done [#allocation9], 512
    $region41: #{rnn_forward.1} parent=1 // pred_fallthru
      _
    %v77 = vld [vmem:[#allocation2] sm:$0xff]
    %v78 = vld [vmem:[#allocation5] sm:$0xff]
    %v79 = vld [vmem:[#allocation5 + $0x8] sm:$0xff]
    %v80 = vld [vmem:[%s3] sm:$0x1]
    %v82 = vlaneseq
    %v83 = vshrl.u32 %v82, 7
    %v84 = vsub.s32 0, %v83
    %v85 = vrot.slane %v80, %v84
    %vm87 = vcmask 130048
    %v89 = vsel %vm87, %v77, 0
    %91 = vmatprep.subr.mxu0 0.0
    %92 = vmatpush1.msra.mxu0 0.0
    %93 = vmatprep.subr.mxu0 0.0
    %94 = vmatpush1.msra.mxu0 0.0
    %95 = vmatprep.subr.mxu0 0.0
    %96 = vmatpush1.msra.mxu0 0.0
    %97 = vmatprep.subr.mxu0 0.0
    %98 = vmatpush1.msra.mxu0 0.0
    %99 = vmatprep.subr.mxu0 0.0
    %100 = vmatpush1.msra.mxu0 0.0
    %101 = vmatprep.subr.mxu0 0.0
    %102 = vmatpush1.msra.mxu0 0.0
    %103 = vmatprep.subr.mxu0 0.0
    %104 = vmatpush1.msra.mxu0 0.0
    %105 = vmatprep.subr.mxu0 0.0
    %106 = vmatpush1.msra.mxu0 0.0
    %107 = vmatprep.subr.mxu0 0.0
    %108 = vmatpush1.msra.mxu0 0.0
    %109 = vmatprep.subr.mxu0 0.0
    %110 = vmatpush1.msra.mxu0 0.0
    %111 = vmatprep.subr.mxu0 0.0
    %112 = vmatpush1.msra.mxu0 0.0
    %113 = vmatprep.subr.mxu0 0.0
    %114 = vmatpush1.msra.mxu0 0.0
    %115 = vmatprep.subr.mxu0 0.0
    %116 = vmatpush1.msra.mxu0 0.0
    %117 = vmatprep.subr.mxu0 0.0
    %118 = vmatpush1.msra.mxu0 0.0
    %119 = vmatprep.subr.mxu0 0.0
    %120 = vmatpush1.msra.mxu0 %v79
    %121 = vmatprep.subr.mxu0 0.0
    %122 = vmatpush1.msra.mxu0 %v78
    %123 = vmatprep.subr.mxu0 0.0
    %124 = vmatpush2.msra.mxu0 0.0
    %125 = vmatprep.subr.mxu0 0.0
    %126 = vmatpush2.msra.mxu0 0.0
    %127 = vmatprep.subr.mxu0 0.0
    %128 = vmatpush2.msra.mxu0 0.0
    %129 = vmatprep.subr.mxu0 0.0
    %130 = vmatpush2.msra.mxu0 0.0
    %131 = vmatprep.subr.mxu0 0.0
    %132 = vmatpush2.msra.mxu0 0.0
    %133 = vmatprep.subr.mxu0 0.0
    %134 = vmatpush2.msra.mxu0 0.0
    %135 = vmatprep.subr.mxu0 0.0
    %136 = vmatpush2.msra.mxu0 0.0
    %137 = vmatprep.subr.mxu0 0.0
    %138 = vmatpush2.msra.mxu0 0.0
    %139 = vmatprep.subr.mxu0 0.0
    %140 = vmatpush2.msra.mxu0 0.0
    %141 = vmatprep.subr.mxu0 0.0
    %142 = vmatpush2.msra.mxu0 0.0
    %143 = vmatprep.subr.mxu0 0.0
    %144 = vmatpush2.msra.mxu0 0.0
    %145 = vmatprep.subr.mxu0 0.0
    %146 = vmatpush2.msra.mxu0 0.0
    %147 = vmatprep.subr.mxu0 0.0
    %148 = vmatpush2.msra.mxu0 0.0
    %149 = vmatprep.subr.mxu0 0.0
    %150 = vmatpush2.msra.mxu0 0.0
    %151 = vmatprep.subr.mxu0 0.0
    %152 = vmatpush2.msra.mxu0 0.0
    %153 = vmatprep.subr.mxu0 0.0
    %154 = vmatpush2.msra.mxu0 0.0
    %155 = vmatprep.mubr.f32.mxu0 0.0
    %156 = vmatmul.mubr.f32.gmra.mxu0 %v89
    %v157 = vpop.f32.mrf.mxu0
    %v158 = vadd.f32 %v85, %v157
    %v159 = vpop.f32.mrf.mxu0
    %160 = vdwg.mxu0
    %v161 = vld [vmem:[#allocation7] sm:$0xff]
    %v162 = vld [vmem:[#allocation7 + $0x8] sm:$0xff]
    %v163 = vld [vmem:[#allocation7 + $0x10] sm:$0xff]
    %v164 = vld [vmem:[#allocation7 + $0x18] sm:$0xff]
    %vm165 = vcmask 261120
    %v167 = vsel %vm165, 0.0, 0
    %169 = vmatprep.subr.mxu0 0.0
    %170 = vmatpush1.msra.mxu0 0.0
    %171 = vmatprep.subr.mxu0 0.0
    %172 = vmatpush1.msra.mxu0 0.0
    %173 = vmatprep.subr.mxu0 0.0
    %174 = vmatpush1.msra.mxu0 0.0
    %175 = vmatprep.subr.mxu0 0.0
    %176 = vmatpush1.msra.mxu0 0.0
    %177 = vmatprep.subr.mxu0 0.0
    %178 = vmatpush1.msra.mxu0 0.0
    %179 = vmatprep.subr.mxu0 0.0
    %180 = vmatpush1.msra.mxu0 0.0
    %181 = vmatprep.subr.mxu0 0.0
    %182 = vmatpush1.msra.mxu0 0.0
    %183 = vmatprep.subr.mxu0 0.0
    %184 = vmatpush1.msra.mxu0 0.0
    %185 = vmatprep.subr.mxu0 0.0
    %186 = vmatpush1.msra.mxu0 0.0
    %187 = vmatprep.subr.mxu0 0.0
    %188 = vmatpush1.msra.mxu0 0.0
    %189 = vmatprep.subr.mxu0 0.0
    %190 = vmatpush1.msra.mxu0 0.0
    %191 = vmatprep.subr.mxu0 0.0
    %192 = vmatpush1.msra.mxu0 0.0
    %193 = vmatprep.subr.mxu0 0.0
    %194 = vmatpush1.msra.mxu0 %v164
    %195 = vmatprep.subr.mxu0 0.0
    %196 = vmatpush1.msra.mxu0 %v163
    %197 = vmatprep.subr.mxu0 0.0
    %198 = vmatpush1.msra.mxu0 %v162
    %199 = vmatprep.subr.mxu0 0.0
    %200 = vmatpush1.msra.mxu0 %v161
    %201 = vmatprep.subr.mxu0 0.0
    %202 = vmatpush2.msra.mxu0 0.0
    %203 = vmatprep.subr.mxu0 0.0
    %204 = vmatpush2.msra.mxu0 0.0
    %205 = vmatprep.subr.mxu0 0.0
    %206 = vmatpush2.msra.mxu0 0.0
    %207 = vmatprep.subr.mxu0 0.0
    %208 = vmatpush2.msra.mxu0 0.0
    %209 = vmatprep.subr.mxu0 0.0
    %210 = vmatpush2.msra.mxu0 0.0
    %211 = vmatprep.subr.mxu0 0.0
    %212 = vmatpush2.msra.mxu0 0.0
    %213 = vmatprep.subr.mxu0 0.0
    %214 = vmatpush2.msra.mxu0 0.0
    %215 = vmatprep.subr.mxu0 0.0
    %216 = vmatpush2.msra.mxu0 0.0
    %217 = vmatprep.subr.mxu0 0.0
    %218 = vmatpush2.msra.mxu0 0.0
    %219 = vmatprep.subr.mxu0 0.0
    %220 = vmatpush2.msra.mxu0 0.0
    %221 = vmatprep.subr.mxu0 0.0
    %222 = vmatpush2.msra.mxu0 0.0
    %223 = vmatprep.subr.mxu0 0.0
    %224 = vmatpush2.msra.mxu0 0.0
    %225 = vmatprep.subr.mxu0 0.0
    %226 = vmatpush2.msra.mxu0 0.0
    %227 = vmatprep.subr.mxu0 0.0
    %228 = vmatpush2.msra.mxu0 0.0
    %229 = vmatprep.subr.mxu0 0.0
    %230 = vmatpush2.msra.mxu0 0.0
    %231 = vmatprep.subr.mxu0 0.0
    %232 = vmatpush2.msra.mxu0 0.0
    %233 = vmatprep.mubr.f32.mxu0 0.0
    %234 = vmatmul.mubr.f32.gmra.mxu0 %v167
    %v235 = vpop.f32.mrf.mxu0
    %v236 = vadd.f32 0.0, %v235
    %v237 = vpop.f32.mrf.mxu0
    %238 = vdwg.mxu0
    %v239 = vadd.f32 %v158, %v236
    %v240 = vtanh.pop %v239
    %v242 = vsel %vm165, %v240, 0
    %244 = vmatprep.subr.mxu0 0.0
    %245 = vmatpush1.msra.mxu0 0.0
    %246 = vmatprep.subr.mxu0 0.0
    %247 = vmatpush1.msra.mxu0 0.0
    %248 = vmatprep.subr.mxu0 0.0
    %249 = vmatpush1.msra.mxu0 0.0
    %250 = vmatprep.subr.mxu0 0.0
    %251 = vmatpush1.msra.mxu0 0.0
    %252 = vmatprep.subr.mxu0 0.0
    %253 = vmatpush1.msra.mxu0 0.0
    %254 = vmatprep.subr.mxu0 0.0
    %255 = vmatpush1.msra.mxu0 0.0
    %256 = vmatprep.subr.mxu0 0.0
    %257 = vmatpush1.msra.mxu0 0.0
    %258 = vmatprep.subr.mxu0 0.0
    %259 = vmatpush1.msra.mxu0 0.0
    %260 = vmatprep.subr.mxu0 0.0
    %261 = vmatpush1.msra.mxu0 0.0
    %262 = vmatprep.subr.mxu0 0.0
    %263 = vmatpush1.msra.mxu0 0.0
    %264 = vmatprep.subr.mxu0 0.0
    %265 = vmatpush1.msra.mxu0 0.0
    %266 = vmatprep.subr.mxu0 0.0
    %267 = vmatpush1.msra.mxu0 0.0
    %268 = vmatprep.subr.mxu0 0.0
    %269 = vmatpush1.msra.mxu0 %v164
    %270 = vmatprep.subr.mxu0 0.0
    %271 = vmatpush1.msra.mxu0 %v163
    %272 = vmatprep.subr.mxu0 0.0
    %273 = vmatpush1.msra.mxu0 %v162
    %274 = vmatprep.subr.mxu0 0.0
    %275 = vmatpush1.msra.mxu0 %v161
    %276 = vmatprep.subr.mxu0 0.0
    %277 = vmatpush2.msra.mxu0 0.0
    %278 = vmatprep.subr.mxu0 0.0
    %279 = vmatpush2.msra.mxu0 0.0
    %280 = vmatprep.subr.mxu0 0.0
    %281 = vmatpush2.msra.mxu0 0.0
    %282 = vmatprep.subr.mxu0 0.0
    %283 = vmatpush2.msra.mxu0 0.0
    %284 = vmatprep.subr.mxu0 0.0
    %285 = vmatpush2.msra.mxu0 0.0
    %286 = vmatprep.subr.mxu0 0.0
    %287 = vmatpush2.msra.mxu0 0.0
    %288 = vmatprep.subr.mxu0 0.0
    %289 = vmatpush2.msra.mxu0 0.0
    %290 = vmatprep.subr.mxu0 0.0
    %291 = vmatpush2.msra.mxu0 0.0
    %292 = vmatprep.subr.mxu0 0.0
    %293 = vmatpush2.msra.mxu0 0.0
    %294 = vmatprep.subr.mxu0 0.0
    %295 = vmatpush2.msra.mxu0 0.0
    %296 = vmatprep.subr.mxu0 0.0
    %297 = vmatpush2.msra.mxu0 0.0
    %298 = vmatprep.subr.mxu0 0.0
    %299 = vmatpush2.msra.mxu0 0.0
    %300 = vmatprep.subr.mxu0 0.0
    %301 = vmatpush2.msra.mxu0 0.0
    %302 = vmatprep.subr.mxu0 0.0
    %303 = vmatpush2.msra.mxu0 0.0
    %304 = vmatprep.subr.mxu0 0.0
    %305 = vmatpush2.msra.mxu0 0.0
    %306 = vmatprep.subr.mxu0 0.0
    %307 = vmatpush2.msra.mxu0 0.0
    %308 = vmatprep.mubr.f32.mxu0 0.0
    %309 = vmatmul.mubr.f32.gmra.mxu0 %v242
    %v310 = vpop.f32.mrf.mxu0
    %v311 = vadd.f32 0.0, %v310
    %v312 = vpop.f32.mrf.mxu0
    %313 = vdwg.mxu0
    %v315 = vrot.slane %v311, 7
    %v317 = vadd.f32 %v158, %v315
    %v318 = vtanh.pop %v317
    %v320 = vrot.slane %v318, 1
    %v321 = vsel %vm165, %v320, 0
    %323 = vmatprep.subr.mxu0 0.0
    %324 = vmatpush1.msra.mxu0 0.0
    %325 = vmatprep.subr.mxu0 0.0
    %326 = vmatpush1.msra.mxu0 0.0
    %327 = vmatprep.subr.mxu0 0.0
    %328 = vmatpush1.msra.mxu0 0.0
    %329 = vmatprep.subr.mxu0 0.0
    %330 = vmatpush1.msra.mxu0 0.0
    %331 = vmatprep.subr.mxu0 0.0
    %332 = vmatpush1.msra.mxu0 0.0
    %333 = vmatprep.subr.mxu0 0.0
    %334 = vmatpush1.msra.mxu0 0.0
    %335 = vmatprep.subr.mxu0 0.0
    %336 = vmatpush1.msra.mxu0 0.0
    %337 = vmatprep.subr.mxu0 0.0
    %338 = vmatpush1.msra.mxu0 0.0
    %339 = vmatprep.subr.mxu0 0.0
    %340 = vmatpush1.msra.mxu0 0.0
    %341 = vmatprep.subr.mxu0 0.0
    %342 = vmatpush1.msra.mxu0 0.0
    %343 = vmatprep.subr.mxu0 0.0
    %344 = vmatpush1.msra.mxu0 0.0
    %345 = vmatprep.subr.mxu0 0.0
    %346 = vmatpush1.msra.mxu0 0.0
    %347 = vmatprep.subr.mxu0 0.0
    %348 = vmatpush1.msra.mxu0 %v164
    %349 = vmatprep.subr.mxu0 0.0
    %350 = vmatpush1.msra.mxu0 %v163
    %351 = vmatprep.subr.mxu0 0.0
    %352 = vmatpush1.msra.mxu0 %v162
    %353 = vmatprep.subr.mxu0 0.0
    %354 = vmatpush1.msra.mxu0 %v161
    %355 = vmatprep.subr.mxu0 0.0
    %356 = vmatpush2.msra.mxu0 0.0
    %357 = vmatprep.subr.mxu0 0.0
    %358 = vmatpush2.msra.mxu0 0.0
    %359 = vmatprep.subr.mxu0 0.0
    %360 = vmatpush2.msra.mxu0 0.0
    %361 = vmatprep.subr.mxu0 0.0
    %362 = vmatpush2.msra.mxu0 0.0
    %363 = vmatprep.subr.mxu0 0.0
    %364 = vmatpush2.msra.mxu0 0.0
    %365 = vmatprep.subr.mxu0 0.0
    %366 = vmatpush2.msra.mxu0 0.0
    %367 = vmatprep.subr.mxu0 0.0
    %368 = vmatpush2.msra.mxu0 0.0
    %369 = vmatprep.subr.mxu0 0.0
    %370 = vmatpush2.msra.mxu0 0.0
    %371 = vmatprep.subr.mxu0 0.0
    %372 = vmatpush2.msra.mxu0 0.0
    %373 = vmatprep.subr.mxu0 0.0
    %374 = vmatpush2.msra.mxu0 0.0
    %375 = vmatprep.subr.mxu0 0.0
    %376 = vmatpush2.msra.mxu0 0.0
    %377 = vmatprep.subr.mxu0 0.0
    %378 = vmatpush2.msra.mxu0 0.0
    %379 = vmatprep.subr.mxu0 0.0
    %380 = vmatpush2.msra.mxu0 0.0
    %381 = vmatprep.subr.mxu0 0.0
    %382 = vmatpush2.msra.mxu0 0.0
    %383 = vmatprep.subr.mxu0 0.0
    %384 = vmatpush2.msra.mxu0 0.0
    %385 = vmatprep.subr.mxu0 0.0
    %386 = vmatpush2.msra.mxu0 0.0
    %387 = vmatprep.mubr.f32.mxu0 0.0
    %388 = vmatmul.mubr.f32.gmra.mxu0 %v321
    %v389 = vpop.f32.mrf.mxu0
    %v390 = vadd.f32 0.0, %v389
    %v391 = vpop.f32.mrf.mxu0
    %392 = vdwg.mxu0
    %v394 = vrot.slane %v390, 6
    %v396 = vadd.f32 %v158, %v394
    %v397 = vtanh.pop %v396
    %v399 = vrot.slane %v397, 2
    %v400 = vsel %vm165, %v399, 0
    %402 = vmatprep.subr.mxu0 0.0
    %403 = vmatpush1.msra.mxu0 0.0
    %404 = vmatprep.subr.mxu0 0.0
    %405 = vmatpush1.msra.mxu0 0.0
    %406 = vmatprep.subr.mxu0 0.0
    %407 = vmatpush1.msra.mxu0 0.0
    %408 = vmatprep.subr.mxu0 0.0
    %409 = vmatpush1.msra.mxu0 0.0
    %410 = vmatprep.subr.mxu0 0.0
    %411 = vmatpush1.msra.mxu0 0.0
    %412 = vmatprep.subr.mxu0 0.0
    %413 = vmatpush1.msra.mxu0 0.0
    %414 = vmatprep.subr.mxu0 0.0
    %415 = vmatpush1.msra.mxu0 0.0
    %416 = vmatprep.subr.mxu0 0.0
    %417 = vmatpush1.msra.mxu0 0.0
    %418 = vmatprep.subr.mxu0 0.0
    %419 = vmatpush1.msra.mxu0 0.0
    %420 = vmatprep.subr.mxu0 0.0
    %421 = vmatpush1.msra.mxu0 0.0
    %422 = vmatprep.subr.mxu0 0.0
    %423 = vmatpush1.msra.mxu0 0.0
    %424 = vmatprep.subr.mxu0 0.0
    %425 = vmatpush1.msra.mxu0 0.0
    %426 = vmatprep.subr.mxu0 0.0
    %427 = vmatpush1.msra.mxu0 %v164
    %428 = vmatprep.subr.mxu0 0.0
    %429 = vmatpush1.msra.mxu0 %v163
    %430 = vmatprep.subr.mxu0 0.0
    %431 = vmatpush1.msra.mxu0 %v162
    %432 = vmatprep.subr.mxu0 0.0
    %433 = vmatpush1.msra.mxu0 %v161
    %434 = vmatprep.subr.mxu0 0.0
    %435 = vmatpush2.msra.mxu0 0.0
    %436 = vmatprep.subr.mxu0 0.0
    %437 = vmatpush2.msra.mxu0 0.0
    %438 = vmatprep.subr.mxu0 0.0
    %439 = vmatpush2.msra.mxu0 0.0
    %440 = vmatprep.subr.mxu0 0.0
    %441 = vmatpush2.msra.mxu0 0.0
    %442 = vmatprep.subr.mxu0 0.0
    %443 = vmatpush2.msra.mxu0 0.0
    %444 = vmatprep.subr.mxu0 0.0
    %445 = vmatpush2.msra.mxu0 0.0
    %446 = vmatprep.subr.mxu0 0.0
    %447 = vmatpush2.msra.mxu0 0.0
    %448 = vmatprep.subr.mxu0 0.0
    %449 = vmatpush2.msra.mxu0 0.0
    %450 = vmatprep.subr.mxu0 0.0
    %451 = vmatpush2.msra.mxu0 0.0
    %452 = vmatprep.subr.mxu0 0.0
    %453 = vmatpush2.msra.mxu0 0.0
    %454 = vmatprep.subr.mxu0 0.0
    %455 = vmatpush2.msra.mxu0 0.0
    %456 = vmatprep.subr.mxu0 0.0
    %457 = vmatpush2.msra.mxu0 0.0
    %458 = vmatprep.subr.mxu0 0.0
    %459 = vmatpush2.msra.mxu0 0.0
    %460 = vmatprep.subr.mxu0 0.0
    %461 = vmatpush2.msra.mxu0 0.0
    %462 = vmatprep.subr.mxu0 0.0
    %463 = vmatpush2.msra.mxu0 0.0
    %464 = vmatprep.subr.mxu0 0.0
    %465 = vmatpush2.msra.mxu0 0.0
    %466 = vmatprep.mubr.f32.mxu0 0.0
    %467 = vmatmul.mubr.f32.gmra.mxu0 %v400
    %v468 = vpop.f32.mrf.mxu0
    %v469 = vadd.f32 0.0, %v468
    %v470 = vpop.f32.mrf.mxu0
    %471 = vdwg.mxu0
    %v473 = vrot.slane %v469, 5
    %v475 = vadd.f32 %v158, %v473
    %v476 = vtanh.pop %v475
    %v478 = vrot.slane %v476, 3
    %v479 = vsel %vm165, %v478, 0
    %481 = vmatprep.subr.mxu0 0.0
    %482 = vmatpush1.msra.mxu0 0.0
    %483 = vmatprep.subr.mxu0 0.0
    %484 = vmatpush1.msra.mxu0 0.0
    %485 = vmatprep.subr.mxu0 0.0
    %486 = vmatpush1.msra.mxu0 0.0
    %487 = vmatprep.subr.mxu0 0.0
    %488 = vmatpush1.msra.mxu0 0.0
    %489 = vmatprep.subr.mxu0 0.0
    %490 = vmatpush1.msra.mxu0 0.0
    %491 = vmatprep.subr.mxu0 0.0
    %492 = vmatpush1.msra.mxu0 0.0
    %493 = vmatprep.subr.mxu0 0.0
    %494 = vmatpush1.msra.mxu0 0.0
    %495 = vmatprep.subr.mxu0 0.0
    %496 = vmatpush1.msra.mxu0 0.0
    %497 = vmatprep.subr.mxu0 0.0
    %498 = vmatpush1.msra.mxu0 0.0
    %499 = vmatprep.subr.mxu0 0.0
    %500 = vmatpush1.msra.mxu0 0.0
    %501 = vmatprep.subr.mxu0 0.0
    %502 = vmatpush1.msra.mxu0 0.0
    %503 = vmatprep.subr.mxu0 0.0
    %504 = vmatpush1.msra.mxu0 0.0
    %505 = vmatprep.subr.mxu0 0.0
    %506 = vmatpush1.msra.mxu0 %v164
    %507 = vmatprep.subr.mxu0 0.0
    %508 = vmatpush1.msra.mxu0 %v163
    %509 = vmatprep.subr.mxu0 0.0
    %510 = vmatpush1.msra.mxu0 %v162
    %511 = vmatprep.subr.mxu0 0.0
    %512 = vmatpush1.msra.mxu0 %v161
    %513 = vmatprep.subr.mxu0 0.0
    %514 = vmatpush2.msra.mxu0 0.0
    %515 = vmatprep.subr.mxu0 0.0
    %516 = vmatpush2.msra.mxu0 0.0
    %517 = vmatprep.subr.mxu0 0.0
    %518 = vmatpush2.msra.mxu0 0.0
    %519 = vmatprep.subr.mxu0 0.0
    %520 = vmatpush2.msra.mxu0 0.0
    %521 = vmatprep.subr.mxu0 0.0
    %522 = vmatpush2.msra.mxu0 0.0
    %523 = vmatprep.subr.mxu0 0.0
    %524 = vmatpush2.msra.mxu0 0.0
    %525 = vmatprep.subr.mxu0 0.0
    %526 = vmatpush2.msra.mxu0 0.0
    %527 = vmatprep.subr.mxu0 0.0
    %528 = vmatpush2.msra.mxu0 0.0
    %529 = vmatprep.subr.mxu0 0.0
    %530 = vmatpush2.msra.mxu0 0.0
    %531 = vmatprep.subr.mxu0 0.0
    %532 = vmatpush2.msra.mxu0 0.0
    %533 = vmatprep.subr.mxu0 0.0
    %534 = vmatpush2.msra.mxu0 0.0
    %535 = vmatprep.subr.mxu0 0.0
    %536 = vmatpush2.msra.mxu0 0.0
    %537 = vmatprep.subr.mxu0 0.0
    %538 = vmatpush2.msra.mxu0 0.0
    %539 = vmatprep.subr.mxu0 0.0
    %540 = vmatpush2.msra.mxu0 0.0
    %541 = vmatprep.subr.mxu0 0.0
    %542 = vmatpush2.msra.mxu0 0.0
    %543 = vmatprep.subr.mxu0 0.0
    %544 = vmatpush2.msra.mxu0 0.0
    %545 = vmatprep.mubr.f32.mxu0 0.0
    %546 = vmatmul.mubr.f32.gmra.mxu0 %v479
    %v547 = vpop.f32.mrf.mxu0
    %v548 = vadd.f32 0.0, %v547
    %v549 = vpop.f32.mrf.mxu0
    %550 = vdwg.mxu0
    %v552 = vrot.slane %v548, 4
    %v554 = vadd.f32 %v158, %v552
    %v555 = vtanh.pop %v554
    %v557 = vrot.slane %v555, 4
    %v558 = vsel %vm165, %v557, 0
    %560 = vmatprep.subr.mxu0 0.0
    %561 = vmatpush1.msra.mxu0 0.0
    %562 = vmatprep.subr.mxu0 0.0
    %563 = vmatpush1.msra.mxu0 0.0
    %564 = vmatprep.subr.mxu0 0.0
    %565 = vmatpush1.msra.mxu0 0.0
    %566 = vmatprep.subr.mxu0 0.0
    %567 = vmatpush1.msra.mxu0 0.0
    %568 = vmatprep.subr.mxu0 0.0
    %569 = vmatpush1.msra.mxu0 0.0
    %570 = vmatprep.subr.mxu0 0.0
    %571 = vmatpush1.msra.mxu0 0.0
    %572 = vmatprep.subr.mxu0 0.0
    %573 = vmatpush1.msra.mxu0 0.0
    %574 = vmatprep.subr.mxu0 0.0
    %575 = vmatpush1.msra.mxu0 0.0
    %576 = vmatprep.subr.mxu0 0.0
    %577 = vmatpush1.msra.mxu0 0.0
    %578 = vmatprep.subr.mxu0 0.0
    %579 = vmatpush1.msra.mxu0 0.0
    %580 = vmatprep.subr.mxu0 0.0
    %581 = vmatpush1.msra.mxu0 0.0
    %582 = vmatprep.subr.mxu0 0.0
    %583 = vmatpush1.msra.mxu0 0.0
    %584 = vmatprep.subr.mxu0 0.0
    %585 = vmatpush1.msra.mxu0 %v164
    %586 = vmatprep.subr.mxu0 0.0
    %587 = vmatpush1.msra.mxu0 %v163
    %588 = vmatprep.subr.mxu0 0.0
    %589 = vmatpush1.msra.mxu0 %v162
    %590 = vmatprep.subr.mxu0 0.0
    %591 = vmatpush1.msra.mxu0 %v161
    %592 = vmatprep.subr.mxu0 0.0
    %593 = vmatpush2.msra.mxu0 0.0
    %594 = vmatprep.subr.mxu0 0.0
    %595 = vmatpush2.msra.mxu0 0.0
    %596 = vmatprep.subr.mxu0 0.0
    %597 = vmatpush2.msra.mxu0 0.0
    %598 = vmatprep.subr.mxu0 0.0
    %599 = vmatpush2.msra.mxu0 0.0
    %600 = vmatprep.subr.mxu0 0.0
    %601 = vmatpush2.msra.mxu0 0.0
    %602 = vmatprep.subr.mxu0 0.0
    %603 = vmatpush2.msra.mxu0 0.0
    %604 = vmatprep.subr.mxu0 0.0
    %605 = vmatpush2.msra.mxu0 0.0
    %606 = vmatprep.subr.mxu0 0.0
    %607 = vmatpush2.msra.mxu0 0.0
    %608 = vmatprep.subr.mxu0 0.0
    %609 = vmatpush2.msra.mxu0 0.0
    %610 = vmatprep.subr.mxu0 0.0
    %611 = vmatpush2.msra.mxu0 0.0
    %612 = vmatprep.subr.mxu0 0.0
    %613 = vmatpush2.msra.mxu0 0.0
    %614 = vmatprep.subr.mxu0 0.0
    %615 = vmatpush2.msra.mxu0 0.0
    %616 = vmatprep.subr.mxu0 0.0
    %617 = vmatpush2.msra.mxu0 0.0
    %618 = vmatprep.subr.mxu0 0.0
    %619 = vmatpush2.msra.mxu0 0.0
    %620 = vmatprep.subr.mxu0 0.0
    %621 = vmatpush2.msra.mxu0 0.0
    %622 = vmatprep.subr.mxu0 0.0
    %623 = vmatpush2.msra.mxu0 0.0
    %624 = vmatprep.mubr.f32.mxu0 0.0
    %625 = vmatmul.mubr.f32.gmra.mxu0 %v558
    %v626 = vpop.f32.mrf.mxu0
    %v627 = vadd.f32 0.0, %v626
    %v628 = vpop.f32.mrf.mxu0
    %629 = vdwg.mxu0
    %v631 = vrot.slane %v627, 3
    %v633 = vadd.f32 %v158, %v631
    %v634 = vtanh.pop %v633
    %v636 = vrot.slane %v634, 5
    %v637 = vsel %vm165, %v636, 0
    %639 = vmatprep.subr.mxu0 0.0
    %640 = vmatpush1.msra.mxu0 0.0
    %641 = vmatprep.subr.mxu0 0.0
    %642 = vmatpush1.msra.mxu0 0.0
    %643 = vmatprep.subr.mxu0 0.0
    %644 = vmatpush1.msra.mxu0 0.0
    %645 = vmatprep.subr.mxu0 0.0
    %646 = vmatpush1.msra.mxu0 0.0
    %647 = vmatprep.subr.mxu0 0.0
    %648 = vmatpush1.msra.mxu0 0.0
    %649 = vmatprep.subr.mxu0 0.0
    %650 = vmatpush1.msra.mxu0 0.0
    %651 = vmatprep.subr.mxu0 0.0
    %652 = vmatpush1.msra.mxu0 0.0
    %653 = vmatprep.subr.mxu0 0.0
    %654 = vmatpush1.msra.mxu0 0.0
    %655 = vmatprep.subr.mxu0 0.0
    %656 = vmatpush1.msra.mxu0 0.0
    %657 = vmatprep.subr.mxu0 0.0
    %658 = vmatpush1.msra.mxu0 0.0
    %659 = vmatprep.subr.mxu0 0.0
    %660 = vmatpush1.msra.mxu0 0.0
    %661 = vmatprep.subr.mxu0 0.0
    %662 = vmatpush1.msra.mxu0 0.0
    %663 = vmatprep.subr.mxu0 0.0
    %664 = vmatpush1.msra.mxu0 %v164
    %665 = vmatprep.subr.mxu0 0.0
    %666 = vmatpush1.msra.mxu0 %v163
    %667 = vmatprep.subr.mxu0 0.0
    %668 = vmatpush1.msra.mxu0 %v162
    %669 = vmatprep.subr.mxu0 0.0
    %670 = vmatpush1.msra.mxu0 %v161
    %671 = vmatprep.subr.mxu0 0.0
    %672 = vmatpush2.msra.mxu0 0.0
    %673 = vmatprep.subr.mxu0 0.0
    %674 = vmatpush2.msra.mxu0 0.0
    %675 = vmatprep.subr.mxu0 0.0
    %676 = vmatpush2.msra.mxu0 0.0
    %677 = vmatprep.subr.mxu0 0.0
    %678 = vmatpush2.msra.mxu0 0.0
    %679 = vmatprep.subr.mxu0 0.0
    %680 = vmatpush2.msra.mxu0 0.0
    %681 = vmatprep.subr.mxu0 0.0
    %682 = vmatpush2.msra.mxu0 0.0
    %683 = vmatprep.subr.mxu0 0.0
    %684 = vmatpush2.msra.mxu0 0.0
    %685 = vmatprep.subr.mxu0 0.0
    %686 = vmatpush2.msra.mxu0 0.0
    %687 = vmatprep.subr.mxu0 0.0
    %688 = vmatpush2.msra.mxu0 0.0
    %689 = vmatprep.subr.mxu0 0.0
    %690 = vmatpush2.msra.mxu0 0.0
    %691 = vmatprep.subr.mxu0 0.0
    %692 = vmatpush2.msra.mxu0 0.0
    %693 = vmatprep.subr.mxu0 0.0
    %694 = vmatpush2.msra.mxu0 0.0
    %695 = vmatprep.subr.mxu0 0.0
    %696 = vmatpush2.msra.mxu0 0.0
    %697 = vmatprep.subr.mxu0 0.0
    %698 = vmatpush2.msra.mxu0 0.0
    %699 = vmatprep.subr.mxu0 0.0
    %700 = vmatpush2.msra.mxu0 0.0
    %701 = vmatprep.subr.mxu0 0.0
    %702 = vmatpush2.msra.mxu0 0.0
    %703 = vmatprep.mubr.f32.mxu0 0.0
    %704 = vmatmul.mubr.f32.gmra.mxu0 %v637
    %v705 = vpop.f32.mrf.mxu0
    %v706 = vadd.f32 0.0, %v705
    %v707 = vpop.f32.mrf.mxu0
    %708 = vdwg.mxu0
    %v710 = vrot.slane %v706, 2
    %v712 = vadd.f32 %v158, %v710
    %v713 = vtanh.pop %v712
    %v715 = vrot.slane %v713, 6
    %v716 = vsel %vm165, %v715, 0
    %718 = vmatprep.subr.mxu0 0.0
    %719 = vmatpush1.msra.mxu0 0.0
    %720 = vmatprep.subr.mxu0 0.0
    %721 = vmatpush1.msra.mxu0 0.0
    %722 = vmatprep.subr.mxu0 0.0
    %723 = vmatpush1.msra.mxu0 0.0
    %724 = vmatprep.subr.mxu0 0.0
    %725 = vmatpush1.msra.mxu0 0.0
    %726 = vmatprep.subr.mxu0 0.0
    %727 = vmatpush1.msra.mxu0 0.0
    %728 = vmatprep.subr.mxu0 0.0
    %729 = vmatpush1.msra.mxu0 0.0
    %730 = vmatprep.subr.mxu0 0.0
    %731 = vmatpush1.msra.mxu0 0.0
    %732 = vmatprep.subr.mxu0 0.0
    %733 = vmatpush1.msra.mxu0 0.0
    %734 = vmatprep.subr.mxu0 0.0
    %735 = vmatpush1.msra.mxu0 0.0
    %736 = vmatprep.subr.mxu0 0.0
    %737 = vmatpush1.msra.mxu0 0.0
    %738 = vmatprep.subr.mxu0 0.0
    %739 = vmatpush1.msra.mxu0 0.0
    %740 = vmatprep.subr.mxu0 0.0
    %741 = vmatpush1.msra.mxu0 0.0
    %742 = vmatprep.subr.mxu0 0.0
    %743 = vmatpush1.msra.mxu0 %v164
    %744 = vmatprep.subr.mxu0 0.0
    %745 = vmatpush1.msra.mxu0 %v163
    %746 = vmatprep.subr.mxu0 0.0
    %747 = vmatpush1.msra.mxu0 %v162
    %748 = vmatprep.subr.mxu0 0.0
    %749 = vmatpush1.msra.mxu0 %v161
    %750 = vmatprep.subr.mxu0 0.0
    %751 = vmatpush2.msra.mxu0 0.0
    %752 = vmatprep.subr.mxu0 0.0
    %753 = vmatpush2.msra.mxu0 0.0
    %754 = vmatprep.subr.mxu0 0.0
    %755 = vmatpush2.msra.mxu0 0.0
    %756 = vmatprep.subr.mxu0 0.0
    %757 = vmatpush2.msra.mxu0 0.0
    %758 = vmatprep.subr.mxu0 0.0
    %759 = vmatpush2.msra.mxu0 0.0
    %760 = vmatprep.subr.mxu0 0.0
    %761 = vmatpush2.msra.mxu0 0.0
    %762 = vmatprep.subr.mxu0 0.0
    %763 = vmatpush2.msra.mxu0 0.0
    %764 = vmatprep.subr.mxu0 0.0
    %765 = vmatpush2.msra.mxu0 0.0
    %766 = vmatprep.subr.mxu0 0.0
    %767 = vmatpush2.msra.mxu0 0.0
    %768 = vmatprep.subr.mxu0 0.0
    %769 = vmatpush2.msra.mxu0 0.0
    %770 = vmatprep.subr.mxu0 0.0
    %771 = vmatpush2.msra.mxu0 0.0
    %772 = vmatprep.subr.mxu0 0.0
    %773 = vmatpush2.msra.mxu0 0.0
    %774 = vmatprep.subr.mxu0 0.0
    %775 = vmatpush2.msra.mxu0 0.0
    %776 = vmatprep.subr.mxu0 0.0
    %777 = vmatpush2.msra.mxu0 0.0
    %778 = vmatprep.subr.mxu0 0.0
    %779 = vmatpush2.msra.mxu0 0.0
    %780 = vmatprep.subr.mxu0 0.0
    %781 = vmatpush2.msra.mxu0 0.0
    %782 = vmatprep.mubr.f32.mxu0 0.0
    %783 = vmatmul.mubr.f32.gmra.mxu0 %v716
    %v784 = vpop.f32.mrf.mxu0
    %v785 = vadd.f32 0.0, %v784
    %v786 = vpop.f32.mrf.mxu0
    %787 = vdwg.mxu0
    %v789 = vrot.slane %v785, 1
    %v791 = vadd.f32 %v158, %v789
    %v792 = vtanh.pop %v791
    %v793 = vld [vmem:[#allocation8] sm:$0xff]
    %v794 = vld [vmem:[#allocation8 + $0x8] sm:$0xff]
    %v795 = vld [vmem:[#allocation8 + $0x10] sm:$0xff]
    %v796 = vld [vmem:[#allocation8 + $0x18] sm:$0xff]
    %v797 = vld [vmem:[%s5] sm:$0x1]
    %v799 = vrot.slane %v792, 7
    %v800 = vsel %vm165, %v799, 0
    %802 = vmatprep.subr.mxu0 0.0
    %803 = vmatpush1.msra.mxu0 0.0
    %804 = vmatprep.subr.mxu0 0.0
    %805 = vmatpush1.msra.mxu0 0.0
    %806 = vmatprep.subr.mxu0 0.0
    %807 = vmatpush1.msra.mxu0 0.0
    %808 = vmatprep.subr.mxu0 0.0
    %809 = vmatpush1.msra.mxu0 0.0
    %810 = vmatprep.subr.mxu0 0.0
    %811 = vmatpush1.msra.mxu0 0.0
    %812 = vmatprep.subr.mxu0 0.0
    %813 = vmatpush1.msra.mxu0 0.0
    %814 = vmatprep.subr.mxu0 0.0
    %815 = vmatpush1.msra.mxu0 0.0
    %816 = vmatprep.subr.mxu0 0.0
    %817 = vmatpush1.msra.mxu0 0.0
    %818 = vmatprep.subr.mxu0 0.0
    %819 = vmatpush1.msra.mxu0 0.0
    %820 = vmatprep.subr.mxu0 0.0
    %821 = vmatpush1.msra.mxu0 0.0
    %822 = vmatprep.subr.mxu0 0.0
    %823 = vmatpush1.msra.mxu0 0.0
    %824 = vmatprep.subr.mxu0 0.0
    %825 = vmatpush1.msra.mxu0 0.0
    %826 = vmatprep.subr.mxu0 0.0
    %827 = vmatpush1.msra.mxu0 %v796
    %828 = vmatprep.subr.mxu0 0.0
    %829 = vmatpush1.msra.mxu0 %v795
    %830 = vmatprep.subr.mxu0 0.0
    %831 = vmatpush1.msra.mxu0 %v794
    %832 = vmatprep.subr.mxu0 0.0
    %833 = vmatpush1.msra.mxu0 %v793
    %834 = vmatprep.subr.mxu0 0.0
    %835 = vmatpush2.msra.mxu0 0.0
    %836 = vmatprep.subr.mxu0 0.0
    %837 = vmatpush2.msra.mxu0 0.0
    %838 = vmatprep.subr.mxu0 0.0
    %839 = vmatpush2.msra.mxu0 0.0
    %840 = vmatprep.subr.mxu0 0.0
    %841 = vmatpush2.msra.mxu0 0.0
    %842 = vmatprep.subr.mxu0 0.0
    %843 = vmatpush2.msra.mxu0 0.0
    %844 = vmatprep.subr.mxu0 0.0
    %845 = vmatpush2.msra.mxu0 0.0
    %846 = vmatprep.subr.mxu0 0.0
    %847 = vmatpush2.msra.mxu0 0.0
    %848 = vmatprep.subr.mxu0 0.0
    %849 = vmatpush2.msra.mxu0 0.0
    %850 = vmatprep.subr.mxu0 0.0
    %851 = vmatpush2.msra.mxu0 0.0
    %852 = vmatprep.subr.mxu0 0.0
    %853 = vmatpush2.msra.mxu0 0.0
    %854 = vmatprep.subr.mxu0 0.0
    %855 = vmatpush2.msra.mxu0 0.0
    %856 = vmatprep.subr.mxu0 0.0
    %857 = vmatpush2.msra.mxu0 0.0
    %858 = vmatprep.subr.mxu0 0.0
    %859 = vmatpush2.msra.mxu0 0.0
    %860 = vmatprep.subr.mxu0 0.0
    %861 = vmatpush2.msra.mxu0 0.0
    %862 = vmatprep.subr.mxu0 0.0
    %863 = vmatpush2.msra.mxu0 0.0
    %864 = vmatprep.subr.mxu0 0.0
    %865 = vmatpush2.msra.mxu0 0.0
    %866 = vmatprep.mubr.f32.mxu0 0.0
    %867 = vmatmul.mubr.f32.gmra.mxu0 %v800
    %v868 = vpop.f32.mrf.mxu0
    %v869 = vadd.f32 %v797, %v868
    %v870 = vpop.f32.mrf.mxu0
    %871 = vdwg.mxu0
    %v872 = vlaneseq
    %v873 = vand.u32 %v872, 127
    %vm874 = vcmp.lt.s32.totalorder %v873, 5
    %v875 = vsel %vm874, %v869, -1e+30
    %vm876 = vcmask 1040384
    %v877 = vsel %vm876, %v875, -inf
    %878 = vmax.xlane.f32.xlu0 %v877
    %v879 = vpop.xlane.xlu0 %878
    %v880 = vsub.f32 %v875, %v879
    %v881 = vmul.f32 %v880, 1.442695
    %v882 = vpow.pop %v881
    %v883 = vsel %vm876, %v882, 0.0
    %884 = vadd.xlane.f32.xlu0 %v883
    %v885 = vpop.xlane.xlu0 %884
    %v886 = vlog2.pop %v885
    %v887 = vmul.f32 %v886, 0.6931472
    %v888 = vsub.f32 %v869, %v879
    %v889 = vsub.f32 %v888, %v887
    %890 = vst [vmem:[#allocation10] sm:$0x1] %v889
    // Predicated region
    $region42: #{rnn_forward.1} parent=1 // pred_check
      _
    $region43: #{rnn_forward.1} parent=1 // pred_check_branch
      %892 = sbr.rel (0) target = $region45
    $region44: #{rnn_forward.1} parent=1 // pred_region
      %s894 = ssub.s32 16, 16
      %895 = vsyncadd [#allocation4], %s894
      %s897 = sshll.u32 [#allocation10], 4
      %s898 = int_to_ptr.vmem [resolvable:$true] %s897
      %900 = dma.vmem_to_hbm [thread:$0]  %s898, 16, %s6, [#allocation4]
    $region45: #{rnn_forward.1} parent=1 // pred_fallthru
      _
    // Predicated region
    $region46: #{rnn_forward.1} parent=1 // pred_check
      _
    $region47: #{rnn_forward.1} parent=1 // pred_check_branch
      %902 = sbr.rel (0) target = $region49
    $region48: #{rnn_forward.1} parent=1 // pred_region
      %903 = dma.done [#allocation4], 16
    $region49: #{rnn_forward.1} parent=1 // pred_fallthru
      _
    %904 = vsyncpa [#allocation3], 1
    %905 = vsyncpa [#allocation6], 1
    %906 = vsyncpa [#allocation9], 1
    %907 = vsyncpa [#allocation4], 1

</llo_original>
